<compile_context>
chip_gen: v7x
topology: tpu7x:2x2x1
jax: 0.10.0
libtpu: 0.0.40
codegen_flags: <defaults>
</compile_context>

<pallas_src>
import math
import jax
import jax.numpy as jnp
from jax.experimental import pallas as pl
from jax.experimental.pallas import tpu as pltpu


def _sigmoid(z):
    # numerically stable, single-EUP-op sigmoid
    return 0.5 * (jnp.tanh(0.5 * z) + 1.0)


def lstm_seq_kernel(x_ref, wx_ref, ws_ref, bx_ref, bs_ref,
                    h_all_ref, sf_out_ref,
                    s_scr, f_scr):
    t = pl.program_id(0)

    @pl.when(t == 0)
    def _init():
        # Lstm.forward starts with s_prev = f_prev = zeros
        s_scr[...] = jnp.zeros_like(s_scr)
        f_scr[...] = jnp.zeros_like(f_scr)

    H = s_scr.shape[-1]

    x = x_ref[...]            # (B, I)  matmul dtype
    s_prev = s_scr[...]       # (B, H)  f32
    f_prev = f_scr[...]       # (B, H)  f32

    # Two fused, lane-dense matmuls instead of six narrow ones.
    xz = jnp.dot(x, wx_ref[...],
                 preferred_element_type=jnp.float32) + bx_ref[...]      # (B, 4H)
    sz = jnp.dot(s_prev.astype(ws_ref.dtype), ws_ref[...],
                 preferred_element_type=jnp.float32) + bs_ref[...]      # (B, 2H)

    xs  = xz[:, 0 * H:1 * H]             # x @ w_s
    f_s = _sigmoid(xz[:, 1 * H:2 * H])   # sigmoid(x @ wf_s + bf_s)
    o_s = _sigmoid(xz[:, 2 * H:3 * H])   # sigmoid(x @ wo_s + bo_s)
    xw  = xz[:, 3 * H:4 * H]             # x @ w
    f_f = _sigmoid(sz[:, 0 * H:1 * H])   # sigmoid(s_prev @ wf_f + bf_f)
    o_f = _sigmoid(sz[:, 1 * H:2 * H])   # sigmoid(s_prev @ wo_f + bo_f)

    s = xs * (1.0 - f_s) + s_prev * f_s
    f = s_prev * (1.0 - f_s) + f_prev * f_f
    h = jnp.tanh(s) * o_s + jnp.tanh(f) * o_f + xw

    s_scr[...] = s
    f_scr[...] = f
    h_all_ref[...] = h.astype(h_all_ref.dtype)
    # Packed (s | f) final-state slab; this output block is VMEM-resident
    # across the whole grid and is written back to HBM once at the end.
    sf_out_ref[...] = jnp.concatenate([s, f], axis=-1).astype(sf_out_ref.dtype)


def pack_params(params, matmul_dtype=jnp.float32):
    H = params["w_s"].shape[1]
    wx = jnp.concatenate(
        [params["w_s"], params["wf_s"], params["wo_s"], params["w"]],
        axis=1).astype(matmul_dtype)                                    # (I, 4H)
    ws = jnp.concatenate(
        [params["wf_f"], params["wo_f"]], axis=1).astype(matmul_dtype)  # (H, 2H)
    zero = jnp.zeros((H,), jnp.float32)
    bx = jnp.concatenate(
        [zero, params["bf_s"], params["bo_s"], zero]).reshape(1, 4 * H)
    bs = jnp.concatenate(
        [params["bf_f"], params["bo_f"]]).reshape(1, 2 * H)
    return wx, ws, bx.astype(jnp.float32), bs.astype(jnp.float32)


def lstm_pallas(x, params, matmul_dtype=jnp.float32):
    """x: (B, T, I). Returns (h_all (T,B,H) f32, s_final (B,H), f_final (B,H))."""
    assert x.ndim == 3
    B, T, I = x.shape
    H = params["w_s"].shape[1]

    wx, ws, bx, bs = pack_params(params, matmul_dtype)
    xt = jnp.transpose(x, (1, 0, 2)).astype(matmul_dtype)   # (T, B, I), step-contiguous

    resident = lambda t: (0, 0)   # weights / biases stay in VMEM across all steps

    h_all, sf = pl.pallas_call(
        lstm_seq_kernel,
        out_shape=(
            jax.ShapeDtypeStruct((T, B, H), jnp.float32),
            jax.ShapeDtypeStruct((B, 2 * H), jnp.float32),
        ),
        grid_spec=pltpu.PrefetchScalarGridSpec(
            num_scalar_prefetch=0,
            grid=(T,),
            in_specs=[
                pl.BlockSpec((None, B, I), lambda t: (t, 0, 0)),  # x_t streamed per step
                pl.BlockSpec((I, 4 * H), resident),               # packed x-weights
                pl.BlockSpec((H, 2 * H), resident),               # packed s-weights
                pl.BlockSpec((1, 4 * H), resident),               # packed x-biases
                pl.BlockSpec((1, 2 * H), resident),               # packed s-biases
            ],
            out_specs=[
                pl.BlockSpec((None, B, H), lambda t: (t, 0, 0)),  # h per step
                pl.BlockSpec((B, 2 * H), resident),               # final (s | f) slab
            ],
            scratch_shapes=[
                pltpu.VMEM((B, H), jnp.float32),   # recurrent s
                pltpu.VMEM((B, H), jnp.float32),   # recurrent f
            ],
        ),
        compiler_params=pltpu.CompilerParams(
            dimension_semantics=("arbitrary",),    # recurrence over time
        ),
    )(xt, wx, ws, bx, bs)

    return h_all, sf[:, :H], sf[:, H:]


def lstm_forward(x, params, matmul_dtype=jnp.float32):
    """Matches Lstm.forward: returns (h_last (B,1,H), h_stacked (B,1,T,H))."""
    B, T, _ = x.shape
    H = params["w_s"].shape[1]
    h_all, _, _ = lstm_pallas(x, params, matmul_dtype)
    h_last = h_all[-1].reshape(B, 1, H)
    # torch.stack(h_out, dim=1).squeeze().unsqueeze(1)  ->  (B, 1, T, H)
    h_stacked = jnp.transpose(h_all, (1, 0, 2))[:, None, :, :]
    return h_last, h_stacked


# ---------------- init + pure-JAX reference ----------------

def xavier_uniform(key, shape, dtype=jnp.float32):
    fan_in, fan_out = shape[0], shape[1]
    limit = math.sqrt(6.0 / (fan_in + fan_out))
    return jax.random.uniform(key, shape, dtype, minval=-limit, maxval=limit)


def init_params(key, input_size, hidden_size):
    ks = jax.random.split(key, 6)
    return {
        "w_s":  xavier_uniform(ks[0], (input_size, hidden_size)),
        "w":    xavier_uniform(ks[1], (input_size, hidden_size)),
        "wf_s": xavier_uniform(ks[2], (input_size, hidden_size)),
        "wf_f": xavier_uniform(ks[3], (hidden_size, hidden_size)),
        "wo_s": xavier_uniform(ks[4], (input_size, hidden_size)),
        "wo_f": xavier_uniform(ks[5], (hidden_size, hidden_size)),
        "bf_s": jnp.zeros((hidden_size,), jnp.float32),
        "bf_f": jnp.zeros((hidden_size,), jnp.float32),
        "bo_s": jnp.zeros((hidden_size,), jnp.float32),
        "bo_f": jnp.zeros((hidden_size,), jnp.float32),
    }


def reference_lstm(x, p):
    B, T, _ = x.shape
    H = p["w_s"].shape[1]
    sig = jax.nn.sigmoid
    s = jnp.zeros((B, H), jnp.float32)
    f = jnp.zeros((B, H), jnp.float32)
    hs = []
    for t in range(T):
        xt = x[:, t, :]
        xs  = xt @ p["w_s"]
        f_s = sig(xt @ p["wf_s"] + p["bf_s"])
        f_f = sig(s @ p["wf_f"] + p["bf_f"])
        o_s = sig(xt @ p["wo_s"] + p["bo_s"])
        o_f = sig(s @ p["wo_f"] + p["bo_f"])
        s_new = xs * (1 - f_s) + s * f_s
        f_new = s * (1 - f_s) + f * f_f
        h = jnp.tanh(s_new) * o_s + jnp.tanh(f_new) * o_f + xt @ p["w"]
        s, f = s_new, f_new
        hs.append(h)
    return jnp.stack(hs, axis=0), s, f


if __name__ == "__main__":
    batch, seq_len, input_size, hidden_size = 8, 8, 16, 32

    key = jax.random.PRNGKey(0)
    k_params, k_bias, k_x = jax.random.split(key, 3)

    params = init_params(k_params, input_size, hidden_size)
    # Module init zeroes the biases; use nonzero biases in the test so the
    # bias-packing path is actually exercised (forward semantics unchanged).
    kb = jax.random.split(k_bias, 4)
    for i, name in enumerate(("bf_s", "bf_f", "bo_s", "bo_f")):
        params[name] = 0.1 * jax.random.normal(kb[i], (hidden_size,), jnp.float32)

    x = jax.random.normal(k_x, (batch, seq_len, input_size), jnp.float32)

    h_all, s_fin, f_fin = lstm_pallas(x, params)
    h_last, h_stacked = lstm_forward(x, params)
    jax.block_until_ready((h_all, s_fin, f_fin, h_last, h_stacked))

    # correctness check against pure-JAX reference of the full Lstm recurrence
    h_all_ref, s_ref, f_ref = reference_lstm(x, params)
    assert jnp.allclose(h_all, h_all_ref, atol=1e-4, rtol=1e-4)
    assert jnp.allclose(s_fin, s_ref, atol=1e-4, rtol=1e-4)
    assert jnp.allclose(f_fin, f_ref, atol=1e-4, rtol=1e-4)
    assert h_last.shape == (batch, 1, hidden_size)
    assert h_stacked.shape == (batch, 1, seq_len, hidden_size)
    assert jnp.allclose(h_last[:, 0], h_all_ref[-1], atol=1e-4, rtol=1e-4)

    print("KERNEL_OK")
</pallas_src>

<mosaic_0001>
module attributes {stable_mosaic.version = 11 : i64} {
  func.func @lstm_seq_kernel(%arg0: i32, %arg1: memref<1x8x16xf32, #tpu.memory_space<vmem>>, %arg2: memref<16x128xf32, #tpu.memory_space<vmem>>, %arg3: memref<32x64xf32, #tpu.memory_space<vmem>>, %arg4: memref<1x128xf32, #tpu.memory_space<vmem>>, %arg5: memref<1x64xf32, #tpu.memory_space<vmem>>, %arg6: memref<1x8x32xf32, #tpu.memory_space<vmem>>, %arg7: memref<8x64xf32, #tpu.memory_space<vmem>>, %arg8: memref<8x32xf32, #tpu.memory_space<vmem>>, %arg9: memref<8x32xf32, #tpu.memory_space<vmem>>) attributes {dimension_semantics = [#tpu.dimension_semantics<arbitrary>], iteration_bounds = array<i64: 8>, scalar_prefetch = 0 : i64, scratch_operands = 2 : i64, tpu.core_type = #tpu.core_type<tc>, window_params = [{transform_indices = @transform_0, window_bounds = array<i64: 1, 8, 16>}, {pipeline_mode = #tpu.pipeline_mode<synchronous>, transform_indices = @transform_1, window_bounds = array<i64: 16, 128>}, {pipeline_mode = #tpu.pipeline_mode<synchronous>, transform_indices = @transform_2, window_bounds = array<i64: 32, 64>}, {pipeline_mode = #tpu.pipeline_mode<synchronous>, transform_indices = @transform_3, window_bounds = array<i64: 1, 128>}, {pipeline_mode = #tpu.pipeline_mode<synchronous>, transform_indices = @transform_4, window_bounds = array<i64: 1, 64>}, {transform_indices = @transform_5, window_bounds = array<i64: 1, 8, 32>}, {pipeline_mode = #tpu.pipeline_mode<synchronous>, transform_indices = @transform_6, window_bounds = array<i64: 8, 64>}]} {
    %c0_i32 = arith.constant 0 : i32
    %0 = arith.cmpi eq, %arg0, %c0_i32 : i32
    %1 = arith.extui %0 : i1 to i32
    %c0_i32_0 = arith.constant 0 : i32
    %2 = arith.cmpi ne, %1, %c0_i32_0 : i32
    scf.if %2 {
      %cst_39 = arith.constant 0.000000e+00 : f32
      %74 = vector.broadcast %cst_39 : f32 to vector<8x32xf32>
      %c0_40 = arith.constant 0 : index
      %c0_41 = arith.constant 0 : index
      %75 = vector.load %arg8[%c0_40, %c0_41] : memref<8x32xf32, #tpu.memory_space<vmem>>, vector<8x32xf32>
      tpu.vector_store %arg8[%c0_40, %c0_41], %74 {strides = array<i32>} : memref<8x32xf32, #tpu.memory_space<vmem>>, vector<8x32xf32>,
      %cst_42 = arith.constant 0.000000e+00 : f32
      %76 = vector.broadcast %cst_42 : f32 to vector<8x32xf32>
      %c0_43 = arith.constant 0 : index
      %c0_44 = arith.constant 0 : index
      %77 = vector.load %arg9[%c0_43, %c0_44] : memref<8x32xf32, #tpu.memory_space<vmem>>, vector<8x32xf32>
      tpu.vector_store %arg9[%c0_43, %c0_44], %76 {strides = array<i32>} : memref<8x32xf32, #tpu.memory_space<vmem>>, vector<8x32xf32>,
    } else {
    }
    %c0 = arith.constant 0 : index
    %c0_1 = arith.constant 0 : index
    %c0_2 = arith.constant 0 : index
    %3 = vector.load %arg1[%c0, %c0_1, %c0_2] : memref<1x8x16xf32, #tpu.memory_space<vmem>>, vector<1x8x16xf32>
    %4 = vector.shape_cast %3 : vector<1x8x16xf32> to vector<8x16xf32>
    %c0_3 = arith.constant 0 : index
    %c0_4 = arith.constant 0 : index
    %5 = vector.load %arg8[%c0_3, %c0_4] : memref<8x32xf32, #tpu.memory_space<vmem>>, vector<8x32xf32>
    %c0_5 = arith.constant 0 : index
    %c0_6 = arith.constant 0 : index
    %6 = vector.load %arg9[%c0_5, %c0_6] : memref<8x32xf32, #tpu.memory_space<vmem>>, vector<8x32xf32>
    %c0_7 = arith.constant 0 : index
    %c0_8 = arith.constant 0 : index
    %7 = vector.load %arg2[%c0_7, %c0_8] : memref<16x128xf32, #tpu.memory_space<vmem>>, vector<16x128xf32>
    %cst = arith.constant dense<0.000000e+00> : vector<8x128xf32>
    %8 = tpu.matmul %4, %7, %cst {dimension_numbers = #tpu.dot_dimension_numbers<[1], [0], [0], [1], [0, 0, 1, 1], [], []>} : vector<8x16xf32>, vector<16x128xf32>, vector<8x128xf32> -> vector<8x128xf32>
    %c0_9 = arith.constant 0 : index
    %c0_10 = arith.constant 0 : index
    %9 = vector.load %arg4[%c0_9, %c0_10] : memref<1x128xf32, #tpu.memory_space<vmem>>, vector<1x128xf32>
    %10 = vector.broadcast %9 : vector<1x128xf32> to vector<8x128xf32>
    %11 = arith.addf %8, %10 : vector<8x128xf32>
    %c0_11 = arith.constant 0 : index
    %c0_12 = arith.constant 0 : index
    %12 = vector.load %arg3[%c0_11, %c0_12] : memref<32x64xf32, #tpu.memory_space<vmem>>, vector<32x64xf32>
    %cst_13 = arith.constant dense<0.000000e+00> : vector<8x64xf32>
    %13 = tpu.matmul %5, %12, %cst_13 {dimension_numbers = #tpu.dot_dimension_numbers<[1], [0], [0], [1], [0, 0, 1, 1], [], []>} : vector<8x32xf32>, vector<32x64xf32>, vector<8x64xf32> -> vector<8x64xf32>
    %c0_14 = arith.constant 0 : index
    %c0_15 = arith.constant 0 : index
    %14 = vector.load %arg5[%c0_14, %c0_15] : memref<1x64xf32, #tpu.memory_space<vmem>>, vector<1x64xf32>
    %15 = vector.broadcast %14 : vector<1x64xf32> to vector<8x64xf32>
    %16 = arith.addf %13, %15 : vector<8x64xf32>
    %17 = vector.extract_strided_slice %11 {offsets = [0, 0], sizes = [8, 32], strides = [1, 1]} : vector<8x128xf32> to vector<8x32xf32>
    %18 = vector.extract_strided_slice %11 {offsets = [0, 32], sizes = [8, 32], strides = [1, 1]} : vector<8x128xf32> to vector<8x32xf32>
    %cst_16 = arith.constant 5.000000e-01 : f32
    %19 = vector.broadcast %cst_16 : f32 to vector<8x32xf32>
    %20 = arith.mulf %19, %18 : vector<8x32xf32>
    %21 = math.tanh %20 : vector<8x32xf32>
    %cst_17 = arith.constant 1.000000e+00 : f32
    %22 = vector.broadcast %cst_17 : f32 to vector<8x32xf32>
    %23 = arith.addf %21, %22 : vector<8x32xf32>
    %cst_18 = arith.constant 5.000000e-01 : f32
    %24 = vector.broadcast %cst_18 : f32 to vector<8x32xf32>
    %25 = arith.mulf %24, %23 : vector<8x32xf32>
    %26 = vector.extract_strided_slice %11 {offsets = [0, 64], sizes = [8, 32], strides = [1, 1]} : vector<8x128xf32> to vector<8x32xf32>
    %cst_19 = arith.constant 5.000000e-01 : f32
    %27 = vector.broadcast %cst_19 : f32 to vector<8x32xf32>
    %28 = arith.mulf %27, %26 : vector<8x32xf32>
    %29 = math.tanh %28 : vector<8x32xf32>
    %cst_20 = arith.constant 1.000000e+00 : f32
    %30 = vector.broadcast %cst_20 : f32 to vector<8x32xf32>
    %31 = arith.addf %29, %30 : vector<8x32xf32>
    %cst_21 = arith.constant 5.000000e-01 : f32
    %32 = vector.broadcast %cst_21 : f32 to vector<8x32xf32>
    %33 = arith.mulf %32, %31 : vector<8x32xf32>
    %34 = vector.extract_strided_slice %11 {offsets = [0, 96], sizes = [8, 32], strides = [1, 1]} : vector<8x128xf32> to vector<8x32xf32>
    %35 = vector.extract_strided_slice %16 {offsets = [0, 0], sizes = [8, 32], strides = [1, 1]} : vector<8x64xf32> to vector<8x32xf32>
    %cst_22 = arith.constant 5.000000e-01 : f32
    %36 = vector.broadcast %cst_22 : f32 to vector<8x32xf32>
    %37 = arith.mulf %36, %35 : vector<8x32xf32>
    %38 = math.tanh %37 : vector<8x32xf32>
    %cst_23 = arith.constant 1.000000e+00 : f32
    %39 = vector.broadcast %cst_23 : f32 to vector<8x32xf32>
    %40 = arith.addf %38, %39 : vector<8x32xf32>
    %cst_24 = arith.constant 5.000000e-01 : f32
    %41 = vector.broadcast %cst_24 : f32 to vector<8x32xf32>
    %42 = arith.mulf %41, %40 : vector<8x32xf32>
    %43 = vector.extract_strided_slice %16 {offsets = [0, 32], sizes = [8, 32], strides = [1, 1]} : vector<8x64xf32> to vector<8x32xf32>
    %cst_25 = arith.constant 5.000000e-01 : f32
    %44 = vector.broadcast %cst_25 : f32 to vector<8x32xf32>
    %45 = arith.mulf %44, %43 : vector<8x32xf32>
    %46 = math.tanh %45 : vector<8x32xf32>
    %cst_26 = arith.constant 1.000000e+00 : f32
    %47 = vector.broadcast %cst_26 : f32 to vector<8x32xf32>
    %48 = arith.addf %46, %47 : vector<8x32xf32>
    %cst_27 = arith.constant 5.000000e-01 : f32
    %49 = vector.broadcast %cst_27 : f32 to vector<8x32xf32>
    %50 = arith.mulf %49, %48 : vector<8x32xf32>
    %cst_28 = arith.constant 1.000000e+00 : f32
    %51 = vector.broadcast %cst_28 : f32 to vector<8x32xf32>
    %52 = arith.subf %51, %25 : vector<8x32xf32>
    %53 = arith.mulf %17, %52 : vector<8x32xf32>
    %54 = arith.mulf %5, %25 : vector<8x32xf32>
    %55 = arith.addf %53, %54 : vector<8x32xf32>
    %cst_29 = arith.constant 1.000000e+00 : f32
    %56 = vector.broadcast %cst_29 : f32 to vector<8x32xf32>
    %57 = arith.subf %56, %25 : vector<8x32xf32>
    %58 = arith.mulf %5, %57 : vector<8x32xf32>
    %59 = arith.mulf %6, %42 : vector<8x32xf32>
    %60 = arith.addf %58, %59 : vector<8x32xf32>
    %61 = math.tanh %55 : vector<8x32xf32>
    %62 = arith.mulf %61, %33 : vector<8x32xf32>
    %63 = math.tanh %60 : vector<8x32xf32>
    %64 = arith.mulf %63, %50 : vector<8x32xf32>
    %65 = arith.addf %62, %64 : vector<8x32xf32>
    %66 = arith.addf %65, %34 : vector<8x32xf32>
    %c0_30 = arith.constant 0 : index
    %c0_31 = arith.constant 0 : index
    %67 = vector.load %arg8[%c0_30, %c0_31] : memref<8x32xf32, #tpu.memory_space<vmem>>, vector<8x32xf32>
    tpu.vector_store %arg8[%c0_30, %c0_31], %55 {strides = array<i32>} : memref<8x32xf32, #tpu.memory_space<vmem>>, vector<8x32xf32>,
    %c0_32 = arith.constant 0 : index
    %c0_33 = arith.constant 0 : index
    %68 = vector.load %arg9[%c0_32, %c0_33] : memref<8x32xf32, #tpu.memory_space<vmem>>, vector<8x32xf32>
    tpu.vector_store %arg9[%c0_32, %c0_33], %60 {strides = array<i32>} : memref<8x32xf32, #tpu.memory_space<vmem>>, vector<8x32xf32>,
    %c0_34 = arith.constant 0 : index
    %c0_35 = arith.constant 0 : index
    %c0_36 = arith.constant 0 : index
    %69 = vector.load %arg6[%c0_34, %c0_35, %c0_36] : memref<1x8x32xf32, #tpu.memory_space<vmem>>, vector<1x8x32xf32>
    %70 = vector.shape_cast %69 : vector<1x8x32xf32> to vector<8x32xf32>
    %71 = vector.shape_cast %66 : vector<8x32xf32> to vector<1x8x32xf32>
    tpu.vector_store %arg6[%c0_34, %c0_35, %c0_36], %71 {strides = array<i32>} : memref<1x8x32xf32, #tpu.memory_space<vmem>>, vector<1x8x32xf32>,
    %72 = tpu.concatenate %55, %60 in 1 : vector<8x32xf32>, vector<8x32xf32> -> vector<8x64xf32>
    %c0_37 = arith.constant 0 : index
    %c0_38 = arith.constant 0 : index
    %73 = vector.load %arg7[%c0_37, %c0_38] : memref<8x64xf32, #tpu.memory_space<vmem>>, vector<8x64xf32>
    tpu.vector_store %arg7[%c0_37, %c0_38], %72 {strides = array<i32>} : memref<8x64xf32, #tpu.memory_space<vmem>>, vector<8x64xf32>,
    return
  }
  func.func @transform_0(%arg0: i32) -> (i32, i32, i32) {
    %c0_i32 = arith.constant 0 : i32
    %c0_i32_0 = arith.constant 0 : i32
    %c0_i32_1 = arith.constant 0 : i32
    return %arg0, %c0_i32, %c0_i32_0 : i32, i32, i32
  }
  func.func @transform_1(%arg0: i32) -> (i32, i32) {
    %c0_i32 = arith.constant 0 : i32
    %c0_i32_0 = arith.constant 0 : i32
    %c0_i32_1 = arith.constant 0 : i32
    return %c0_i32, %c0_i32_0 : i32, i32
  }
  func.func @transform_2(%arg0: i32) -> (i32, i32) {
    %c0_i32 = arith.constant 0 : i32
    %c0_i32_0 = arith.constant 0 : i32
    %c0_i32_1 = arith.constant 0 : i32
    return %c0_i32, %c0_i32_0 : i32, i32
  }
  func.func @transform_3(%arg0: i32) -> (i32, i32) {
    %c0_i32 = arith.constant 0 : i32
    %c0_i32_0 = arith.constant 0 : i32
    %c0_i32_1 = arith.constant 0 : i32
    return %c0_i32, %c0_i32_0 : i32, i32
  }
  func.func @transform_4(%arg0: i32) -> (i32, i32) {
    %c0_i32 = arith.constant 0 : i32
    %c0_i32_0 = arith.constant 0 : i32
    %c0_i32_1 = arith.constant 0 : i32
    return %c0_i32, %c0_i32_0 : i32, i32
  }
  func.func @transform_5(%arg0: i32) -> (i32, i32, i32) {
    %c0_i32 = arith.constant 0 : i32
    %c0_i32_0 = arith.constant 0 : i32
    %c0_i32_1 = arith.constant 0 : i32
    return %arg0, %c0_i32, %c0_i32_0 : i32, i32, i32
  }
  func.func @transform_6(%arg0: i32) -> (i32, i32) {
    %c0_i32 = arith.constant 0 : i32
    %c0_i32_0 = arith.constant 0 : i32
    %c0_i32_1 = arith.constant 0 : i32
    return %c0_i32, %c0_i32_0 : i32, i32
  }
}

</mosaic_0001>

<llo_original>
// kernel: tpu_custom_call.1
$region0: #{tpu_custom_call.1}
  #allocation0 [shape = 'u32[]', space=smem, size = 0x4, offset = 0x4, fixed_abs, tag = 'smem constant byte address 0x4 - core index']
  #allocation1 [shape = 'u32[144,128]{1,0:T(1,128)}', space=vmem, size = 0x12000, scoped, tag = 'internal scratch']
  #allocation2 [shape = 'f32[8,32]{1,0:T(8,128)}', space=vmem, size = 0x1000, scoped, tag = 'scratch operand']
  #allocation3 [shape = 'f32[8,32]{1,0:T(8,128)}', space=vmem, size = 0x1000, scoped, tag = 'scratch operand']
  %s0 = inlined_call_operand.hbm [shape: f32[8,8,16], index: 0, kind: input, shape index: {}]
  %s1 = inlined_call_operand.hbm [shape: f32[16,128], index: 1, kind: input, shape index: {}]
  %s2 = inlined_call_operand.hbm [shape: f32[32,64], index: 2, kind: input, shape index: {}]
  %s3 = inlined_call_operand.vmem [shape: f32[1,128], index: 3, kind: input, shape index: {}]
  %s4 = inlined_call_operand.vmem [shape: f32[1,64], index: 4, kind: input, shape index: {}]
  %s5 = inlined_call_operand.hbm [shape: f32[8,8,32], index: 5, kind: output, shape index: {0}]
  %s6 = inlined_call_operand.hbm [shape: f32[8,64], index: 6, kind: output, shape index: {1}]
  %7 = xla_tuple %s5, %s6
  %s8 = sld [smem:[#allocation0]]
  $region77: #{tpu_custom_call.1} parent=0
    _
  %s10 = ssub.s32 1, %s8
  %s11 = scalar_select 0, %s10, %s8
  $region1: #{tpu_custom_call.1} parent=0
    #allocation4 [shape = 'u8[8192]{0}', space=vmem, size = 0x2000, scoped, tag = 'input window, operand 0']
    #allocation5 [shape = 's32[2]{0}', space=sflag, size = 0x8, scoped, tag = 'scoped memory for tpu_custom_call.1']
    #allocation6 [shape = 's32[2]{0}', space=sflag, size = 0x8, scoped, tag = 'scoped memory for tpu_custom_call.1']
    #allocation7 [shape = 'u8[8192]{0}', space=vmem, size = 0x2000, scoped, tag = 'input window, operand 1, single buffered']
    #allocation8 [shape = 's32[1]{0}', space=sflag, size = 0x4, scoped, tag = 'scoped memory for tpu_custom_call.1']
    #allocation9 [shape = 'u8[16384]{0}', space=vmem, size = 0x4000, scoped, tag = 'input window, operand 2, single buffered']
    #allocation10 [shape = 'u8[8192]{0}', space=vmem, size = 0x2000, scoped, tag = 'output window, operand 0']
    #allocation11 [shape = 'u8[4096]{0}', space=vmem, size = 0x1000, scoped, tag = 'output window, operand 1, single buffered']
    #allocation12 [shape = 's32[1]{0}', space=sflag, size = 0x4, scoped, tag = 'scoped memory for tpu_custom_call.1']
    %12 = vsyncpa [#allocation5], 0
    %s13 = scalar_lea.sflag [#allocation5], 1
    %14 = vsyncpa %s13, 0
    %15 = vsyncpa [#allocation8], 0
    %16 = vsyncpa [#allocation6], 0
    %s17 = scalar_lea.sflag [#allocation6], 1
    %18 = vsyncpa %s17, 0
    %19 = vsyncpa [#allocation12], 0
    loop: start=0, step=1, limit=10
    $region2: #{tpu_custom_call.1} parent=1 // loop_pre_header
      _
    $region3: #{tpu_custom_call.1} parent=1 // loop_header
      %s21 = sphi 0, %s25
      %p22 = scmp.ge.s32.totalorder %s21, 10
      %s31 = sphi 0, %s33
      %s34 = sphi 0, %s31
      %s35 = sphi 0, %s34
      %s51 = sphi 0, %s35
      %s55 = sphi 0, %s55
      %s57 = sphi 0, %s55
      %s58 = sphi 0, %s57
      %s72 = sphi 0, %s58
      %s76 = sphi 0, %s76
      %s78 = sphi 0, %s76
      %s79 = sphi 0, %s78
      %s93 = sphi 0, %s79
      %s97 = sphi 0, %s97
      %s99 = sphi 0, %s97
      %s100 = sphi 0, %s99
      %s114 = sphi 0, %s100
      %s118 = sphi 0, %s118
      %s120 = sphi 0, %s118
      %s121 = sphi 0, %s120
      %s135 = sphi 0, %s121
      %s141 = sphi 0, %s143
      %s144 = sphi 0, %s141
      %s145 = sphi 0, %s144
      %s161 = sphi 0, %s145
      %s165 = sphi 0, %s165
      %s167 = sphi 0, %s165
      %s168 = sphi 0, %s167
      %s182 = sphi 0, %s168
    $region4: #{tpu_custom_call.1} parent=1 // loop_header_branch
      %24 = sbr.rel (%p22) target = $region8
    $region5: #{tpu_custom_call.1} parent=1 // loop_body
      %s26 = ssub.s32 %s21, 1
      %s27 = ssub.s32 %s21, 2
      %s28 = sadd.s32 %s21, 1
      %s29 = ssub.s32 %s21, %s28
      %p30 = scmp.eq.s32.totalorder %s29, 0
      %s32 = sadd.s32 %s31, 1
      %s33 = scalar_select %p30, %s31, %s32
      %p36 = pneg %p30
      %p37 = scmp.eq.s32.totalorder %s21, 7
      %p38 = por %p36, %p37
      %p39 = scmp.ne.s32.totalorder %s31, %s34
      %p40 = scmp.eq.s32.totalorder %s21, 0
      %p41 = por %p39, %p40
      %p42 = scmp.ne.s32.totalorder %s31, %s34
      %p43 = scmp.eq.s32.totalorder %s26, 7
      %p44 = por %p42, %p43
      %p45 = scmp.ne.s32.totalorder %s34, %s35
      %p46 = scmp.eq.s32.totalorder %s26, 0
      %p47 = por %p45, %p46
      %p48 = scmp.ne.s32.totalorder %s34, %s35
      %p49 = scmp.eq.s32.totalorder %s27, 7
      %p50 = por %p48, %p49
      %p52 = scmp.ne.s32.totalorder %s35, %s51
      %p53 = scmp.eq.s32.totalorder %s27, 0
      %p54 = por %p52, %p53
      %s56 = sadd.s32 %s55, 1
      %p59 = scmp.eq.s32.totalorder %s21, 7
      %p60 = scmp.ne.s32.totalorder %s55, %s57
      %p61 = scmp.eq.s32.totalorder %s21, 0
      %p62 = por %p60, %p61
      %p63 = scmp.ne.s32.totalorder %s55, %s57
      %p64 = scmp.eq.s32.totalorder %s26, 7
      %p65 = por %p63, %p64
      %p66 = scmp.ne.s32.totalorder %s57, %s58
      %p67 = scmp.eq.s32.totalorder %s26, 0
      %p68 = por %p66, %p67
      %p69 = scmp.ne.s32.totalorder %s57, %s58
      %p70 = scmp.eq.s32.totalorder %s27, 7
      %p71 = por %p69, %p70
      %p73 = scmp.ne.s32.totalorder %s58, %s72
      %p74 = scmp.eq.s32.totalorder %s27, 0
      %p75 = por %p73, %p74
      %s77 = sadd.s32 %s76, 1
      %p80 = scmp.eq.s32.totalorder %s21, 7
      %p81 = scmp.ne.s32.totalorder %s76, %s78
      %p82 = scmp.eq.s32.totalorder %s21, 0
      %p83 = por %p81, %p82
      %p84 = scmp.ne.s32.totalorder %s76, %s78
      %p85 = scmp.eq.s32.totalorder %s26, 7
      %p86 = por %p84, %p85
      %p87 = scmp.ne.s32.totalorder %s78, %s79
      %p88 = scmp.eq.s32.totalorder %s26, 0
      %p89 = por %p87, %p88
      %p90 = scmp.ne.s32.totalorder %s78, %s79
      %p91 = scmp.eq.s32.totalorder %s27, 7
      %p92 = por %p90, %p91
      %p94 = scmp.ne.s32.totalorder %s79, %s93
      %p95 = scmp.eq.s32.totalorder %s27, 0
      %p96 = por %p94, %p95
      %s98 = sadd.s32 %s97, 1
      %p101 = scmp.eq.s32.totalorder %s21, 7
      %p102 = scmp.ne.s32.totalorder %s97, %s99
      %p103 = scmp.eq.s32.totalorder %s21, 0
      %p104 = por %p102, %p103
      %p105 = scmp.ne.s32.totalorder %s97, %s99
      %p106 = scmp.eq.s32.totalorder %s26, 7
      %p107 = por %p105, %p106
      %p108 = scmp.ne.s32.totalorder %s99, %s100
      %p109 = scmp.eq.s32.totalorder %s26, 0
      %p110 = por %p108, %p109
      %p111 = scmp.ne.s32.totalorder %s99, %s100
      %p112 = scmp.eq.s32.totalorder %s27, 7
      %p113 = por %p111, %p112
      %p115 = scmp.ne.s32.totalorder %s100, %s114
      %p116 = scmp.eq.s32.totalorder %s27, 0
      %p117 = por %p115, %p116
      %s119 = sadd.s32 %s118, 1
      %p122 = scmp.eq.s32.totalorder %s21, 7
      %p123 = scmp.ne.s32.totalorder %s118, %s120
      %p124 = scmp.eq.s32.totalorder %s21, 0
      %p125 = por %p123, %p124
      %p126 = scmp.ne.s32.totalorder %s118, %s120
      %p127 = scmp.eq.s32.totalorder %s26, 7
      %p128 = por %p126, %p127
      %p129 = scmp.ne.s32.totalorder %s120, %s121
      %p130 = scmp.eq.s32.totalorder %s26, 0
      %p131 = por %p129, %p130
      %p132 = scmp.ne.s32.totalorder %s120, %s121
      %p133 = scmp.eq.s32.totalorder %s27, 7
      %p134 = por %p132, %p133
      %p136 = scmp.ne.s32.totalorder %s121, %s135
      %p137 = scmp.eq.s32.totalorder %s27, 0
      %p138 = por %p136, %p137
      %s139 = ssub.s32 %s21, %s28
      %p140 = scmp.eq.s32.totalorder %s139, 0
      %s142 = sadd.s32 %s141, 1
      %s143 = scalar_select %p140, %s141, %s142
      %p146 = pneg %p140
      %p147 = scmp.eq.s32.totalorder %s21, 7
      %p148 = por %p146, %p147
      %p149 = scmp.ne.s32.totalorder %s141, %s144
      %p150 = scmp.eq.s32.totalorder %s21, 0
      %p151 = por %p149, %p150
      %p152 = scmp.ne.s32.totalorder %s141, %s144
      %p153 = scmp.eq.s32.totalorder %s26, 7
      %p154 = por %p152, %p153
      %p155 = scmp.ne.s32.totalorder %s144, %s145
      %p156 = scmp.eq.s32.totalorder %s26, 0
      %p157 = por %p155, %p156
      %p158 = scmp.ne.s32.totalorder %s144, %s145
      %p159 = scmp.eq.s32.totalorder %s27, 7
      %p160 = por %p158, %p159
      %p162 = scmp.ne.s32.totalorder %s145, %s161
      %p163 = scmp.eq.s32.totalorder %s27, 0
      %p164 = por %p162, %p163
      %s166 = sadd.s32 %s165, 1
      %p169 = scmp.eq.s32.totalorder %s21, 7
      %p170 = scmp.ne.s32.totalorder %s165, %s167
      %p171 = scmp.eq.s32.totalorder %s21, 0
      %p172 = por %p170, %p171
      %p173 = scmp.ne.s32.totalorder %s165, %s167
      %p174 = scmp.eq.s32.totalorder %s26, 7
      %p175 = por %p173, %p174
      %p176 = scmp.ne.s32.totalorder %s167, %s168
      %p177 = scmp.eq.s32.totalorder %s26, 0
      %p178 = por %p176, %p177
      %p179 = scmp.ne.s32.totalorder %s167, %s168
      %p180 = scmp.eq.s32.totalorder %s27, 7
      %p181 = por %p179, %p180
      %p183 = scmp.ne.s32.totalorder %s168, %s182
      %p184 = scmp.eq.s32.totalorder %s27, 0
      %p185 = por %p183, %p184
      %p186 = scmp.le.s32.totalorder 1, %s21
      %p187 = scmp.lt.s32.totalorder %s21, 9
      %p188 = pnand %p186, %p187
      %p189 = pneg %p188
      // Predicated region
      $region9: #{tpu_custom_call.1} parent=5 // pred_check
        _
      $region10: #{tpu_custom_call.1} parent=5 // pred_check_branch
        %191 = sbr.rel (%p188) target = $region12
      $region11: #{tpu_custom_call.1} parent=5 // pred_region
        %s192 = ssub.s32 %s21, 1
        // Predicated region
        $region13: #{tpu_custom_call.1} parent=11 // pred_check
          %p193 = pneg %p68
        $region14: #{tpu_custom_call.1} parent=11 // pred_check_branch
          %195 = sbr.rel (%p193) target = $region16
        $region15: #{tpu_custom_call.1} parent=11 // pred_region
          %s197 = ssub.s32 256, 256
          %198 = vsyncadd [#allocation8], %s197
          %s199 = sshll.u32 [#allocation7], 4
          %s200 = int_to_ptr.vmem [resolvable:$true] %s199
          %205 = dma.hbm_to_vmem [thread:$0]  %s1, 256, %s200, [#allocation8], 128, 128, 8
        $region16: #{tpu_custom_call.1} parent=11 // pred_fallthru
          _
        // Predicated region
        $region17: #{tpu_custom_call.1} parent=11 // pred_check
          %p206 = pneg %p89
        $region18: #{tpu_custom_call.1} parent=11 // pred_check_branch
          %208 = sbr.rel (%p206) target = $region20
        $region19: #{tpu_custom_call.1} parent=11 // pred_region
          %s210 = ssub.s32 512, 512
          %211 = vsyncadd [#allocation8], %s210
          %s212 = sshll.u32 [#allocation9], 4
          %s213 = int_to_ptr.vmem [resolvable:$true] %s212
          %218 = dma.hbm_to_vmem [thread:$0]  %s2, 512, %s213, [#allocation8], 128, 128, 8
        $region20: #{tpu_custom_call.1} parent=11 // pred_fallthru
          _
        // Predicated region
        $region21: #{tpu_custom_call.1} parent=11 // pred_check
          %p219 = pneg %p110
        $region22: #{tpu_custom_call.1} parent=11 // pred_check_branch
          %221 = sbr.rel (%p219) target = $region24
        $region23: #{tpu_custom_call.1} parent=11 // pred_region
          _
        $region24: #{tpu_custom_call.1} parent=11 // pred_fallthru
          _
        // Predicated region
        $region25: #{tpu_custom_call.1} parent=11 // pred_check
          %p222 = pneg %p131
        $region26: #{tpu_custom_call.1} parent=11 // pred_check_branch
          %224 = sbr.rel (%p222) target = $region28
        $region27: #{tpu_custom_call.1} parent=11 // pred_region
          _
        $region28: #{tpu_custom_call.1} parent=11 // pred_fallthru
          _
      $region12: #{tpu_custom_call.1} parent=5 // pred_fallthru
        _
      %p225 = scmp.lt.s32.totalorder %s21, 8
      // Predicated region
      $region29: #{tpu_custom_call.1} parent=5 // pred_check
        %p226 = pneg %p225
      $region30: #{tpu_custom_call.1} parent=5 // pred_check_branch
        %228 = sbr.rel (%p226) target = $region32
      $region31: #{tpu_custom_call.1} parent=5 // pred_region
        // Predicated region
        $region33: #{tpu_custom_call.1} parent=31 // pred_check
          %p229 = pneg %p41
        $region34: #{tpu_custom_call.1} parent=31 // pred_check_branch
          %231 = sbr.rel (%p229) target = $region36
        $region35: #{tpu_custom_call.1} parent=31 // pred_region
          %s232 = sand.u32 %s31, 1
          %s233 = scalar_lea.sflag [#allocation5], %s232
          %s234 = sand.u32 %s31, 1
          %s235 = smul.addr %s234, 8
          %s236 = scalar_lea.vmem [#allocation4], %s235
          %s238 = ssub.s32 128, 128
          %239 = vsyncadd %s233, %s238
          %s240 = smul.addr %s21, 128
          %s241 = scalar_lea.hbm %s0, %s240
          %s243 = sshll.u32 %s236, 4
          %s244 = int_to_ptr.vmem [resolvable:$true] %s243
          %246 = dma.hbm_to_vmem [thread:$0]  %s241, 128, %s244, %s233
        $region36: #{tpu_custom_call.1} parent=31 // pred_fallthru
          _
      $region32: #{tpu_custom_call.1} parent=5 // pred_fallthru
        _
      %p247 = scmp.le.s32.totalorder 1, %s21
      %p248 = scmp.lt.s32.totalorder %s21, 9
      %p249 = pnand %p247, %p248
      %p250 = pneg %p249
      // Predicated region
      $region37: #{tpu_custom_call.1} parent=5 // pred_check
        _
      $region38: #{tpu_custom_call.1} parent=5 // pred_check_branch
        %252 = sbr.rel (%p249) target = $region40
      $region39: #{tpu_custom_call.1} parent=5 // pred_region
        %s253 = ssub.s32 %s21, 1
        %s254 = sand.u32 %s34, 1
        %s255 = scalar_lea.sflag [#allocation5], %s254
        %s256 = sand.u32 %s34, 1
        %s257 = smul.addr %s256, 8
        %s258 = scalar_lea.vmem [#allocation4], %s257
        // Predicated region
        $region41: #{tpu_custom_call.1} parent=39 // pred_check
          %p259 = pneg %p47
        $region42: #{tpu_custom_call.1} parent=39 // pred_check_branch
          %261 = sbr.rel (%p259) target = $region44
        $region43: #{tpu_custom_call.1} parent=39 // pred_region
          %262 = dma.done %s255, 128
        $region44: #{tpu_custom_call.1} parent=39 // pred_fallthru
          _
        // Predicated region
        $region45: #{tpu_custom_call.1} parent=39 // pred_check
          %p263 = pneg %p68
        $region46: #{tpu_custom_call.1} parent=39 // pred_check_branch
          %265 = sbr.rel (%p263) target = $region48
        $region47: #{tpu_custom_call.1} parent=39 // pred_region
          %266 = dma.done [#allocation8], 256
        $region48: #{tpu_custom_call.1} parent=39 // pred_fallthru
          _
        // Predicated region
        $region49: #{tpu_custom_call.1} parent=39 // pred_check
          %p267 = pneg %p89
        $region50: #{tpu_custom_call.1} parent=39 // pred_check_branch
          %269 = sbr.rel (%p267) target = $region52
        $region51: #{tpu_custom_call.1} parent=39 // pred_region
          %270 = dma.done [#allocation8], 512
        $region52: #{tpu_custom_call.1} parent=39 // pred_fallthru
          _
        %s271 = sand.u32 %s34, 1
        %s272 = scalar_lea.sflag [#allocation5], %s271
        %s273 = sand.u32 %s34, 1
        %s274 = smul.addr %s273, 8
        %s275 = scalar_lea.vmem [#allocation4], %s274
        %p276 = pneg %p47
        %p277 = pneg %p44
        %p278 = pneg %p68
        %p279 = pneg %p65
        %p280 = pneg %p89
        %p281 = pneg %p86
        %p282 = pneg %p110
        %p283 = pneg %p107
        %p284 = pneg %p131
        %p285 = pneg %p128
        %p286 = pneg %p157
        %p287 = pneg %p154
        %s288 = sand.u32 %s144, 1
        %s289 = scalar_lea.sflag [#allocation6], %s288
        %s290 = sand.u32 %s144, 1
        %s291 = smul.addr %s290, 8
        %s292 = scalar_lea.vmem [#allocation10], %s291
        %p293 = pneg %p178
        %p294 = pneg %p175
        %p295 = scmp.eq.s32.totalorder %s26, 0
        // Predicated region
        $region53: #{tpu_custom_call.1} parent=39 // pred_check
          %p296 = pneg %p295
        $region54: #{tpu_custom_call.1} parent=39 // pred_check_branch
          %298 = sbr.rel (%p296) target = $region56
        $region55: #{tpu_custom_call.1} parent=39 // pred_region
          %vm299 = vcmask 261120
          %300 = vst.msk [vmem:[#allocation2] sm:$0xff] %vm299, 0.0
          %301 = vst.msk [vmem:[#allocation3] sm:$0xff] %vm299, 0.0
        $region56: #{tpu_custom_call.1} parent=39 // pred_fallthru
          _
        %v302 = vld [vmem:[%s258] sm:$0xff]
        %v303 = vld [vmem:[#allocation2] sm:$0xff]
        %v304 = vld [vmem:[#allocation3] sm:$0xff]
        %v305 = vld [vmem:[#allocation7] sm:$0xff]
        %v306 = vld [vmem:[#allocation7 + $0x8] sm:$0xff]
        %v307 = vld [vmem:[%s3] sm:$0x1]
        %v309 = vlaneseq
        %v310 = vshrl.u32 %v309, 7
        %v311 = vsub.s32 0, %v310
        %v312 = vrot.slane %v307, %v311
        %vm314 = vcmask 130048
        %v316 = vsel %vm314, %v302, 0
        %318 = vmatprep.subr.mxu0 0.0
        %319 = vmatpush1.msra.mxu0 %v305
        %320 = vmatprep.subr.mxu0 0.0
        %321 = vmatpush1.msra.mxu0 %v306
        %322 = vmatprep.subr.mxu0 0.0
        %323 = vmatpush1.msra.mxu0 0.0
        %324 = vmatprep.subr.mxu0 0.0
        %325 = vmatpush1.msra.mxu0 0.0
        %326 = vmatprep.subr.mxu0 0.0
        %327 = vmatpush1.msra.mxu0 0.0
        %328 = vmatprep.subr.mxu0 0.0
        %329 = vmatpush1.msra.mxu0 0.0
        %330 = vmatprep.subr.mxu0 0.0
        %331 = vmatpush1.msra.mxu0 0.0
        %332 = vmatprep.subr.mxu0 0.0
        %333 = vmatpush1.msra.mxu0 0.0
        %334 = vmatprep.subr.mxu0 0.0
        %335 = vmatpush1.msra.mxu0 0.0
        %336 = vmatprep.subr.mxu0 0.0
        %337 = vmatpush1.msra.mxu0 0.0
        %338 = vmatprep.subr.mxu0 0.0
        %339 = vmatpush1.msra.mxu0 0.0
        %340 = vmatprep.subr.mxu0 0.0
        %341 = vmatpush1.msra.mxu0 0.0
        %342 = vmatprep.subr.mxu0 0.0
        %343 = vmatpush1.msra.mxu0 0.0
        %344 = vmatprep.subr.mxu0 0.0
        %345 = vmatpush1.msra.mxu0 0.0
        %346 = vmatprep.subr.mxu0 0.0
        %347 = vmatpush1.msra.mxu0 0.0
        %348 = vmatprep.subr.mxu0 0.0
        %349 = vmatpush1.msra.mxu0 0.0
        %350 = vmatprep.subr.mxu0 0.0
        %351 = vmatpush1.msra.mxu0 0.0
        %352 = vmatprep.subr.mxu0 0.0
        %353 = vmatpush1.msra.mxu0 0.0
        %354 = vmatprep.subr.mxu0 0.0
        %355 = vmatpush1.msra.mxu0 0.0
        %356 = vmatprep.subr.mxu0 0.0
        %357 = vmatpush1.msra.mxu0 0.0
        %358 = vmatprep.subr.mxu0 0.0
        %359 = vmatpush1.msra.mxu0 0.0
        %360 = vmatprep.subr.mxu0 0.0
        %361 = vmatpush1.msra.mxu0 0.0
        %362 = vmatprep.subr.mxu0 0.0
        %363 = vmatpush1.msra.mxu0 0.0
        %364 = vmatprep.subr.mxu0 0.0
        %365 = vmatpush1.msra.mxu0 0.0
        %366 = vmatprep.subr.mxu0 0.0
        %367 = vmatpush1.msra.mxu0 0.0
        %368 = vmatprep.subr.mxu0 0.0
        %369 = vmatpush1.msra.mxu0 0.0
        %370 = vmatprep.subr.mxu0 0.0
        %371 = vmatpush1.msra.mxu0 0.0
        %372 = vmatprep.subr.mxu0 0.0
        %373 = vmatpush1.msra.mxu0 0.0
        %374 = vmatprep.subr.mxu0 0.0
        %375 = vmatpush1.msra.mxu0 0.0
        %376 = vmatprep.subr.mxu0 0.0
        %377 = vmatpush1.msra.mxu0 0.0
        %378 = vmatprep.subr.mxu0 0.0
        %379 = vmatpush1.msra.mxu0 0.0
        %380 = vmatprep.subr.mxu0 0.0
        %381 = vmatpush1.msra.mxu0 0.0
        %382 = vmatprep.mubr.f32.mxu0 0.0
        %383 = vmatmul.mubr.f32.gmra.mrb[0].mxu0 %v316
        %v384 = vpop.f32.mrb[0].mxu0
        %v385 = vadd.f32 %v312, %v384
        %v386 = vpop.f32.mrb[0].mxu0
        %387 = vdwg.mxu0
        %v388 = vld [vmem:[#allocation9] sm:$0xff]
        %v389 = vld [vmem:[#allocation9 + $0x8] sm:$0xff]
        %v390 = vld [vmem:[#allocation9 + $0x10] sm:$0xff]
        %v391 = vld [vmem:[#allocation9 + $0x18] sm:$0xff]
        %v392 = vld [vmem:[%s4] sm:$0x1]
        %v394 = vlaneseq
        %v395 = vshrl.u32 %v394, 7
        %v396 = vsub.s32 0, %v395
        %v397 = vrot.slane %v392, %v396
        %vm399 = vcmask 261120
        %v401 = vsel %vm399, %v303, 0
        %403 = vmatprep.subr.mxu0 0.0
        %404 = vmatpush1.msra.mxu0 %v388
        %405 = vmatprep.subr.mxu0 0.0
        %406 = vmatpush1.msra.mxu0 %v389
        %407 = vmatprep.subr.mxu0 0.0
        %408 = vmatpush1.msra.mxu0 %v390
        %409 = vmatprep.subr.mxu0 0.0
        %410 = vmatpush1.msra.mxu0 %v391
        %411 = vmatprep.subr.mxu0 0.0
        %412 = vmatpush1.msra.mxu0 0.0
        %413 = vmatprep.subr.mxu0 0.0
        %414 = vmatpush1.msra.mxu0 0.0
        %415 = vmatprep.subr.mxu0 0.0
        %416 = vmatpush1.msra.mxu0 0.0
        %417 = vmatprep.subr.mxu0 0.0
        %418 = vmatpush1.msra.mxu0 0.0
        %419 = vmatprep.subr.mxu0 0.0
        %420 = vmatpush1.msra.mxu0 0.0
        %421 = vmatprep.subr.mxu0 0.0
        %422 = vmatpush1.msra.mxu0 0.0
        %423 = vmatprep.subr.mxu0 0.0
        %424 = vmatpush1.msra.mxu0 0.0
        %425 = vmatprep.subr.mxu0 0.0
        %426 = vmatpush1.msra.mxu0 0.0
        %427 = vmatprep.subr.mxu0 0.0
        %428 = vmatpush1.msra.mxu0 0.0
        %429 = vmatprep.subr.mxu0 0.0
        %430 = vmatpush1.msra.mxu0 0.0
        %431 = vmatprep.subr.mxu0 0.0
        %432 = vmatpush1.msra.mxu0 0.0
        %433 = vmatprep.subr.mxu0 0.0
        %434 = vmatpush1.msra.mxu0 0.0
        %435 = vmatprep.subr.mxu0 0.0
        %436 = vmatpush1.msra.mxu0 0.0
        %437 = vmatprep.subr.mxu0 0.0
        %438 = vmatpush1.msra.mxu0 0.0
        %439 = vmatprep.subr.mxu0 0.0
        %440 = vmatpush1.msra.mxu0 0.0
        %441 = vmatprep.subr.mxu0 0.0
        %442 = vmatpush1.msra.mxu0 0.0
        %443 = vmatprep.subr.mxu0 0.0
        %444 = vmatpush1.msra.mxu0 0.0
        %445 = vmatprep.subr.mxu0 0.0
        %446 = vmatpush1.msra.mxu0 0.0
        %447 = vmatprep.subr.mxu0 0.0
        %448 = vmatpush1.msra.mxu0 0.0
        %449 = vmatprep.subr.mxu0 0.0
        %450 = vmatpush1.msra.mxu0 0.0
        %451 = vmatprep.subr.mxu0 0.0
        %452 = vmatpush1.msra.mxu0 0.0
        %453 = vmatprep.subr.mxu0 0.0
        %454 = vmatpush1.msra.mxu0 0.0
        %455 = vmatprep.subr.mxu0 0.0
        %456 = vmatpush1.msra.mxu0 0.0
        %457 = vmatprep.subr.mxu0 0.0
        %458 = vmatpush1.msra.mxu0 0.0
        %459 = vmatprep.subr.mxu0 0.0
        %460 = vmatpush1.msra.mxu0 0.0
        %461 = vmatprep.subr.mxu0 0.0
        %462 = vmatpush1.msra.mxu0 0.0
        %463 = vmatprep.subr.mxu0 0.0
        %464 = vmatpush1.msra.mxu0 0.0
        %465 = vmatprep.subr.mxu0 0.0
        %466 = vmatpush1.msra.mxu0 0.0
        %467 = vmatprep.mubr.f32.mxu0 0.0
        %468 = vmatmul.mubr.f32.gmra.mrb[0].mxu0 %v401
        %v469 = vpop.f32.mrb[0].mxu0
        %v470 = vadd.f32 %v397, %v469
        %v471 = vpop.f32.mrb[0].mxu0
        %472 = vdwg.mxu0
        %v473 = vmul.f32 %v385, 0.5
        %v474 = vtanh.pop %v473
        %v475 = vadd.f32 %v474, 1.0
        %v476 = vmul.f32 %v475, 0.5
        %v477 = vmul.f32 %v470, 0.5
        %v478 = vtanh.pop %v477
        %v479 = vadd.f32 %v478, 1.0
        %v480 = vmul.f32 %v479, 0.5
        %v481 = vsub.f32 1.0, %v476
        %483 = vrot.lane.b32.xlu0 %v481, 96
        %v484 = vpop.permute.xlu0 %483
        %v486 = vmul.f32 %v385, %v484
        %488 = vrot.lane.b32.xlu0 %v476, 96
        %v489 = vpop.permute.xlu0 %488
        %v491 = vmul.f32 %v303, %v489
        %v492 = vadd.f32 %v486, %v491
        %v493 = vmul.f32 %v303, %v484
        %v494 = vmul.f32 %v304, %v480
        %v495 = vadd.f32 %v493, %v494
        %v496 = vtanh.pop %v492
        %497 = vrot.lane.b32.xlu0 %v476, 64
        %v498 = vpop.permute.xlu0 %497
        %v500 = vmul.f32 %v496, %v498
        %v501 = vtanh.pop %v495
        %503 = vrot.lane.b32.xlu0 %v480, 96
        %v504 = vpop.permute.xlu0 %503
        %v506 = vmul.f32 %v501, %v504
        %v507 = vadd.f32 %v500, %v506
        %509 = vrot.lane.b32.xlu0 %v385, 32
        %v510 = vpop.permute.xlu0 %509
        %v512 = vadd.f32 %v507, %v510
        %513 = vst.msk [vmem:[#allocation2] sm:$0xff] %vm399, %v492
        %514 = vst.msk [vmem:[#allocation3] sm:$0xff] %vm399, %v495
        %515 = vst.msk [vmem:[%s292] sm:$0xff] %vm399, %v512
        %517 = vrot.lane.b32.xlu0 %v495, 32
        %v518 = vpop.permute.xlu0 %517
        %v520 = vsel %vm399, %v492, %v518
        %vm521 = vcmask 523264
        %522 = vst.msk [vmem:[#allocation11] sm:$0xff] %vm521, %v520
        %s523 = sand.u32 %s144, 1
        %s524 = scalar_lea.sflag [#allocation6], %s523
        %s525 = sand.u32 %s144, 1
        %s526 = smul.addr %s525, 8
        %s527 = scalar_lea.vmem [#allocation10], %s526
        // Predicated region
        $region57: #{tpu_custom_call.1} parent=39 // pred_check
          %p528 = pneg %p154
        $region58: #{tpu_custom_call.1} parent=39 // pred_check_branch
          %530 = sbr.rel (%p528) target = $region60
        $region59: #{tpu_custom_call.1} parent=39 // pred_region
          %s532 = ssub.s32 128, 128
          %533 = vsyncadd %s524, %s532
          %s534 = smul.addr %s26, 128
          %s535 = scalar_lea.hbm %s5, %s534
          %s537 = sshll.u32 %s527, 4
          %s538 = int_to_ptr.vmem [resolvable:$true] %s537
          %540 = dma.vmem_to_hbm [thread:$0]  %s538, 128, %s535, %s524
        $region60: #{tpu_custom_call.1} parent=39 // pred_fallthru
          _
        // Predicated region
        $region61: #{tpu_custom_call.1} parent=39 // pred_check
          %p541 = pneg %p175
        $region62: #{tpu_custom_call.1} parent=39 // pred_check_branch
          %543 = sbr.rel (%p541) target = $region64
        $region63: #{tpu_custom_call.1} parent=39 // pred_region
          %s545 = ssub.s32 128, 128
          %546 = vsyncadd [#allocation12], %s545
          %s548 = sshll.u32 [#allocation11], 4
          %s549 = int_to_ptr.vmem [resolvable:$true] %s548
          %551 = dma.vmem_to_hbm [thread:$0]  %s549, 128, %s6, [#allocation12]
        $region64: #{tpu_custom_call.1} parent=39 // pred_fallthru
          _
        // Predicated region
        $region65: #{tpu_custom_call.1} parent=39 // pred_check
          %p552 = pneg %p175
        $region66: #{tpu_custom_call.1} parent=39 // pred_check_branch
          %554 = sbr.rel (%p552) target = $region68
        $region67: #{tpu_custom_call.1} parent=39 // pred_region
          %555 = dma.done [#allocation12], 128
        $region68: #{tpu_custom_call.1} parent=39 // pred_fallthru
          _
      $region40: #{tpu_custom_call.1} parent=5 // pred_fallthru
        _
      %p556 = scmp.le.s32.totalorder 2, %s21
      // Predicated region
      $region69: #{tpu_custom_call.1} parent=5 // pred_check
        %p557 = pneg %p556
      $region70: #{tpu_custom_call.1} parent=5 // pred_check_branch
        %559 = sbr.rel (%p557) target = $region72
      $region71: #{tpu_custom_call.1} parent=5 // pred_region
        %s560 = ssub.s32 %s21, 2
        // Predicated region
        $region73: #{tpu_custom_call.1} parent=71 // pred_check
          %p561 = pneg %p160
        $region74: #{tpu_custom_call.1} parent=71 // pred_check_branch
          %563 = sbr.rel (%p561) target = $region76
        $region75: #{tpu_custom_call.1} parent=71 // pred_region
          %s564 = sand.u32 %s145, 1
          %s565 = scalar_lea.sflag [#allocation6], %s564
          %s566 = sand.u32 %s145, 1
          %s567 = smul.addr %s566, 8
          %s568 = scalar_lea.vmem [#allocation10], %s567
          %569 = dma.done %s565, 128
        $region76: #{tpu_custom_call.1} parent=71 // pred_fallthru
          _
      $region72: #{tpu_custom_call.1} parent=5 // pred_fallthru
        _
    $region6: #{tpu_custom_call.1} parent=1 // loop_footer
      %s25 = sadd.s32 1, %s21
    $region7: #{tpu_custom_call.1} parent=1 // loop_footer_branch
      %20 = sbr.rel target = $region3
    $region8: #{tpu_custom_call.1} parent=1 // loop_exit
      _
    %570 = vsyncpa [#allocation5], 1
    %s571 = scalar_lea.sflag [#allocation5], 1
    %572 = vsyncpa %s571, 1
    %573 = vsyncpa [#allocation8], 1
    %574 = vsyncpa [#allocation6], 1
    %s575 = scalar_lea.sflag [#allocation6], 1
    %576 = vsyncpa %s575, 1
    %577 = vsyncpa [#allocation12], 1

</llo_original>
